<compile_context>
chip_gen: v7x
topology: tpu7x:2x2x1
jax: 0.10.0
libtpu: 0.0.40
codegen_flags: <defaults>
</compile_context>

<pallas_src>
import jax
import jax.numpy as jnp
from jax.experimental import pallas as pl
from jax.experimental.pallas import tpu as pltpu


def _round_up(n, m):
    return ((n + m - 1) // m) * m


def dqn_kernel(x_ref, w1_ref, b1_ref, w2_ref, b2_ref, w3_ref, b3_ref, o_ref):
    x = x_ref[...]                                    # [TB, F] f32
    num_obs = x_ref.shape[1]

    # layer1: Linear(num_obs, 128) + ReLU.
    if num_obs <= 8:
        # Tiny K: VPU broadcast FMAs (f32) beat an MXU round trip.
        h1 = x[:, 0:1] * w1_ref[0:1, :]               # [TB, 128]
        for k in range(1, num_obs):                   # static, tiny unrolled loop
            h1 = h1 + x[:, k:k + 1] * w1_ref[k:k + 1, :]
    else:
        h1 = jnp.dot(x, w1_ref[...], preferred_element_type=jnp.float32)
    # Epilogue in f32; cast last so the staged temporary is bf16 when the
    # MXU operands are bf16 (halves VMEM staging bytes / store-slot pressure).
    h1 = jnp.maximum(h1 + b1_ref[...], 0.0).astype(w2_ref.dtype)

    # layer2: Linear(128, 128) + ReLU on the MXU (f32 accumulation).
    h2 = jnp.dot(h1, w2_ref[...], preferred_element_type=jnp.float32)
    h2 = jnp.maximum(h2 + b2_ref[...], 0.0).astype(w3_ref.dtype)

    # layer3: Linear(128, num_actions), no activation.  Output block is only
    # num_actions lanes wide -> narrow HBM writeback (no padded columns).
    o = jnp.dot(h2, w3_ref[...], preferred_element_type=jnp.float32)
    o_ref[...] = (o + b3_ref[...]).astype(o_ref.dtype)


def dqn_forward(x, params, *, block_b=1024, matmul_dtype=jnp.bfloat16):
    """x: [B, num_obs] f32.  params: dict of transposed weights / biases."""
    w1, b1 = params["w1"], params["b1"]
    w2, b2 = params["w2"], params["b2"]
    w3, b3 = params["w3"], params["b3"]

    B, F = x.shape
    H = w1.shape[1]
    num_actions = w3.shape[1]

    # Batch tiling: pad only to a multiple of 8, then pick TB <= block_b that
    # (near-)divides it.  Capping TB at ~B/2 guarantees >=2 grid steps for
    # B >= 16 so the "parallel" axis shards across both TCs on v7x.
    B8 = _round_up(B, 8)
    TB = min(block_b, max(8, _round_up(B8 // 2, 8)))
    B_pad = _round_up(B8, TB)
    if B_pad != B:
        x = jnp.pad(x, ((0, B_pad - B), (0, 0)))

    # MXU operands (w2, w3) in bf16 by default; f32 accumulation in-kernel.
    # Biases and w1 (VPU path) stay f32.
    if matmul_dtype != jnp.float32:
        w2 = w2.astype(matmul_dtype)
        w3 = w3.astype(matmul_dtype)

    out = pl.pallas_call(
        dqn_kernel,
        out_shape=jax.ShapeDtypeStruct((B_pad, num_actions), jnp.float32),
        grid=(B_pad // TB,),
        in_specs=[
            pl.BlockSpec((TB, F), lambda i: (i, 0)),            # x: tiled over batch
            pl.BlockSpec((F, H), lambda i: (0, 0)),             # w1: resident (f32)
            pl.BlockSpec((1, H), lambda i: (0, 0)),             # b1: resident
            pl.BlockSpec((H, H), lambda i: (0, 0)),             # w2: resident
            pl.BlockSpec((1, H), lambda i: (0, 0)),             # b2: resident
            pl.BlockSpec((H, num_actions), lambda i: (0, 0)),   # w3: resident
            pl.BlockSpec((1, num_actions), lambda i: (0, 0)),   # b3: resident
        ],
        out_specs=pl.BlockSpec((TB, num_actions), lambda i: (i, 0)),
        compiler_params=pltpu.CompilerParams(
            dimension_semantics=("parallel",)),
    )(x, w1, b1, w2, b2, w3, b3)

    return out[:B, :]


def init_params(key, num_observations, num_actions, hidden=128):
    """Deterministic init mimicking nn.Linear's U(-1/sqrt(fan_in), 1/sqrt(fan_in)).

    Weights are stored transposed ([in, out]) relative to PyTorch's [out, in].
    """
    ks = jax.random.split(key, 6)

    def lin(kw, kb, fan_in, fan_out):
        bound = 1.0 / jnp.sqrt(fan_in)
        w = jax.random.uniform(kw, (fan_in, fan_out), jnp.float32, -bound, bound)
        b = jax.random.uniform(kb, (1, fan_out), jnp.float32, -bound, bound)
        return w, b

    w1, b1 = lin(ks[0], ks[1], num_observations, hidden)
    w2, b2 = lin(ks[2], ks[3], hidden, hidden)
    w3, b3 = lin(ks[4], ks[5], hidden, num_actions)
    return {"w1": w1, "b1": b1, "w2": w2, "b2": b2, "w3": w3, "b3": b3}


def dqn_reference(x, p):
    h1 = jnp.maximum(x @ p["w1"] + p["b1"], 0.0)
    h2 = jnp.maximum(h1 @ p["w2"] + p["b2"], 0.0)
    return h2 @ p["w3"] + p["b3"]


if __name__ == "__main__":
    num_observations = 2   # as in DQN_POMDP.py
    num_actions = 2        # CartPole-v1 action space
    batch = 8

    key = jax.random.PRNGKey(0)
    k_x, k_p = jax.random.split(key)
    x = jax.random.normal(k_x, (batch, num_observations), jnp.float32)
    params = init_params(k_p, num_observations, num_actions)
    ref = dqn_reference(x, params)

    # Exact path (f32 MXU operands): tight tolerance.
    out_f32 = jax.block_until_ready(
        dqn_forward(x, params, matmul_dtype=jnp.float32))
    assert out_f32.shape == (batch, num_actions)
    assert jnp.allclose(out_f32, ref, atol=1e-5, rtol=1e-5), "mismatch (f32 path)"

    # Default bf16-MXU path: looser tolerance vs f32 reference.
    out_bf16 = jax.block_until_ready(dqn_forward(x, params))
    assert out_bf16.shape == (batch, num_actions)
    assert jnp.allclose(out_bf16, ref, atol=5e-2, rtol=5e-2), "mismatch (bf16 path)"

    # Ragged batch exercises the batch-padding path.
    x5 = x[:5]
    out5 = jax.block_until_ready(
        dqn_forward(x5, params, matmul_dtype=jnp.float32))
    assert out5.shape == (5, num_actions)
    assert jnp.allclose(out5, ref[:5], atol=1e-5, rtol=1e-5), "mismatch (ragged batch)"

    # Batch > 16 exercises the multi-grid-step (>=2 tiles) path.
    x20 = jax.random.normal(k_x, (20, num_observations), jnp.float32)
    out20 = jax.block_until_ready(
        dqn_forward(x20, params, matmul_dtype=jnp.float32))
    ref20 = dqn_reference(x20, params)
    assert out20.shape == (20, num_actions)
    assert jnp.allclose(out20, ref20, atol=1e-5, rtol=1e-5), "mismatch (multi-tile)"

    print("KERNEL_OK")
</pallas_src>

<mosaic_0001>
module attributes {stable_mosaic.version = 11 : i64} {
  func.func @dqn_kernel(%arg0: i32, %arg1: memref<8x2xf32, #tpu.memory_space<vmem>>, %arg2: memref<2x128xf32, #tpu.memory_space<vmem>>, %arg3: memref<1x128xf32, #tpu.memory_space<vmem>>, %arg4: memref<128x128xf32, #tpu.memory_space<vmem>>, %arg5: memref<1x128xf32, #tpu.memory_space<vmem>>, %arg6: memref<128x2xf32, #tpu.memory_space<vmem>>, %arg7: memref<1x2xf32, #tpu.memory_space<vmem>>, %arg8: memref<8x2xf32, #tpu.memory_space<vmem>>) attributes {dimension_semantics = [#tpu.dimension_semantics<parallel>], iteration_bounds = array<i64: 1>, scalar_prefetch = 0 : i64, scratch_operands = 0 : i64, tpu.core_type = #tpu.core_type<tc>, window_params = [{transform_indices = @transform_0, window_bounds = array<i64: 8, 2>}, {pipeline_mode = #tpu.pipeline_mode<synchronous>, transform_indices = @transform_1, window_bounds = array<i64: 2, 128>}, {pipeline_mode = #tpu.pipeline_mode<synchronous>, transform_indices = @transform_2, window_bounds = array<i64: 1, 128>}, {pipeline_mode = #tpu.pipeline_mode<synchronous>, transform_indices = @transform_3, window_bounds = array<i64: 128, 128>}, {pipeline_mode = #tpu.pipeline_mode<synchronous>, transform_indices = @transform_4, window_bounds = array<i64: 1, 128>}, {pipeline_mode = #tpu.pipeline_mode<synchronous>, transform_indices = @transform_5, window_bounds = array<i64: 128, 2>}, {pipeline_mode = #tpu.pipeline_mode<synchronous>, transform_indices = @transform_6, window_bounds = array<i64: 1, 2>}, {transform_indices = @transform_7, window_bounds = array<i64: 8, 2>}]} {
    %c0 = arith.constant 0 : index
    %c0_0 = arith.constant 0 : index
    %0 = vector.load %arg1[%c0, %c0_0] : memref<8x2xf32, #tpu.memory_space<vmem>>, vector<8x2xf32>
    %1 = vector.extract_strided_slice %0 {offsets = [0, 0], sizes = [8, 1], strides = [1, 1]} : vector<8x2xf32> to vector<8x1xf32>
    %c0_1 = arith.constant 0 : index
    %c0_2 = arith.constant 0 : index
    %2 = vector.load %arg2[%c0_1, %c0_2] : memref<2x128xf32, #tpu.memory_space<vmem>>, vector<1x128xf32>
    %3 = vector.broadcast %1 : vector<8x1xf32> to vector<8x128xf32>
    %4 = vector.broadcast %2 : vector<1x128xf32> to vector<8x128xf32>
    %5 = arith.mulf %3, %4 : vector<8x128xf32>
    %6 = vector.extract_strided_slice %0 {offsets = [0, 1], sizes = [8, 1], strides = [1, 1]} : vector<8x2xf32> to vector<8x1xf32>
    %c1 = arith.constant 1 : index
    %c0_3 = arith.constant 0 : index
    %7 = vector.load %arg2[%c1, %c0_3] : memref<2x128xf32, #tpu.memory_space<vmem>>, vector<1x128xf32>
    %8 = vector.broadcast %6 : vector<8x1xf32> to vector<8x128xf32>
    %9 = vector.broadcast %7 : vector<1x128xf32> to vector<8x128xf32>
    %10 = arith.mulf %8, %9 : vector<8x128xf32>
    %11 = arith.addf %5, %10 : vector<8x128xf32>
    %c0_4 = arith.constant 0 : index
    %c0_5 = arith.constant 0 : index
    %12 = vector.load %arg3[%c0_4, %c0_5] : memref<1x128xf32, #tpu.memory_space<vmem>>, vector<1x128xf32>
    %13 = vector.broadcast %12 : vector<1x128xf32> to vector<8x128xf32>
    %14 = arith.addf %11, %13 : vector<8x128xf32>
    %cst = arith.constant 0.000000e+00 : f32
    %15 = vector.broadcast %cst : f32 to vector<8x128xf32>
    %16 = arith.maximumf %14, %15 : vector<8x128xf32>
    %c0_6 = arith.constant 0 : index
    %c0_7 = arith.constant 0 : index
    %17 = vector.load %arg4[%c0_6, %c0_7] : memref<128x128xf32, #tpu.memory_space<vmem>>, vector<128x128xf32>
    %cst_8 = arith.constant dense<0.000000e+00> : vector<8x128xf32>
    %18 = tpu.matmul %16, %17, %cst_8 {dimension_numbers = #tpu.dot_dimension_numbers<[1], [0], [0], [1], [0, 0, 1, 1], [], []>} : vector<8x128xf32>, vector<128x128xf32>, vector<8x128xf32> -> vector<8x128xf32>
    %c0_9 = arith.constant 0 : index
    %c0_10 = arith.constant 0 : index
    %19 = vector.load %arg5[%c0_9, %c0_10] : memref<1x128xf32, #tpu.memory_space<vmem>>, vector<1x128xf32>
    %20 = vector.broadcast %19 : vector<1x128xf32> to vector<8x128xf32>
    %21 = arith.addf %18, %20 : vector<8x128xf32>
    %cst_11 = arith.constant 0.000000e+00 : f32
    %22 = vector.broadcast %cst_11 : f32 to vector<8x128xf32>
    %23 = arith.maximumf %21, %22 : vector<8x128xf32>
    %c0_12 = arith.constant 0 : index
    %c0_13 = arith.constant 0 : index
    %24 = vector.load %arg6[%c0_12, %c0_13] : memref<128x2xf32, #tpu.memory_space<vmem>>, vector<128x2xf32>
    %cst_14 = arith.constant dense<0.000000e+00> : vector<8x2xf32>
    %25 = tpu.matmul %23, %24, %cst_14 {dimension_numbers = #tpu.dot_dimension_numbers<[1], [0], [0], [1], [0, 0, 1, 1], [], []>} : vector<8x128xf32>, vector<128x2xf32>, vector<8x2xf32> -> vector<8x2xf32>
    %c0_15 = arith.constant 0 : index
    %c0_16 = arith.constant 0 : index
    %26 = vector.load %arg7[%c0_15, %c0_16] : memref<1x2xf32, #tpu.memory_space<vmem>>, vector<1x2xf32>
    %27 = vector.broadcast %26 : vector<1x2xf32> to vector<8x2xf32>
    %28 = arith.addf %25, %27 : vector<8x2xf32>
    %c0_17 = arith.constant 0 : index
    %c0_18 = arith.constant 0 : index
    %29 = vector.load %arg8[%c0_17, %c0_18] : memref<8x2xf32, #tpu.memory_space<vmem>>, vector<8x2xf32>
    tpu.vector_store %arg8[%c0_17, %c0_18], %28 {strides = array<i32>} : memref<8x2xf32, #tpu.memory_space<vmem>>, vector<8x2xf32>,
    return
  }
  func.func @transform_0(%arg0: i32) -> (i32, i32) {
    %c0_i32 = arith.constant 0 : i32
    %c0_i32_0 = arith.constant 0 : i32
    return %arg0, %c0_i32 : i32, i32
  }
  func.func @transform_1(%arg0: i32) -> (i32, i32) {
    %c0_i32 = arith.constant 0 : i32
    %c0_i32_0 = arith.constant 0 : i32
    %c0_i32_1 = arith.constant 0 : i32
    return %c0_i32, %c0_i32_0 : i32, i32
  }
  func.func @transform_2(%arg0: i32) -> (i32, i32) {
    %c0_i32 = arith.constant 0 : i32
    %c0_i32_0 = arith.constant 0 : i32
    %c0_i32_1 = arith.constant 0 : i32
    return %c0_i32, %c0_i32_0 : i32, i32
  }
  func.func @transform_3(%arg0: i32) -> (i32, i32) {
    %c0_i32 = arith.constant 0 : i32
    %c0_i32_0 = arith.constant 0 : i32
    %c0_i32_1 = arith.constant 0 : i32
    return %c0_i32, %c0_i32_0 : i32, i32
  }
  func.func @transform_4(%arg0: i32) -> (i32, i32) {
    %c0_i32 = arith.constant 0 : i32
    %c0_i32_0 = arith.constant 0 : i32
    %c0_i32_1 = arith.constant 0 : i32
    return %c0_i32, %c0_i32_0 : i32, i32
  }
  func.func @transform_5(%arg0: i32) -> (i32, i32) {
    %c0_i32 = arith.constant 0 : i32
    %c0_i32_0 = arith.constant 0 : i32
    %c0_i32_1 = arith.constant 0 : i32
    return %c0_i32, %c0_i32_0 : i32, i32
  }
  func.func @transform_6(%arg0: i32) -> (i32, i32) {
    %c0_i32 = arith.constant 0 : i32
    %c0_i32_0 = arith.constant 0 : i32
    %c0_i32_1 = arith.constant 0 : i32
    return %c0_i32, %c0_i32_0 : i32, i32
  }
  func.func @transform_7(%arg0: i32) -> (i32, i32) {
    %c0_i32 = arith.constant 0 : i32
    %c0_i32_0 = arith.constant 0 : i32
    return %arg0, %c0_i32 : i32, i32
  }
}

</mosaic_0001>

<llo_original>
// kernel: tpu_custom_call.1
$region0: #{tpu_custom_call.1}
  #allocation0 [shape = 'u32[]', space=smem, size = 0x4, offset = 0x4, fixed_abs, tag = 'smem constant byte address 0x4 - core index']
  #allocation1 [shape = 'u32[144,128]{1,0:T(1,128)}', space=vmem, size = 0x12000, scoped, tag = 'internal scratch']
  %s0 = inlined_call_operand.vmem [shape: f32[8,2], index: 0, kind: input, shape index: {}]
  %s1 = inlined_call_operand.vmem [shape: f32[2,128], index: 1, kind: input, shape index: {}]
  %s2 = inlined_call_operand.vmem [shape: f32[1,128], index: 2, kind: input, shape index: {}]
  %s3 = inlined_call_operand.vmem [shape: f32[128,128], index: 3, kind: input, shape index: {}]
  %s4 = inlined_call_operand.vmem [shape: f32[1,128], index: 4, kind: input, shape index: {}]
  %s5 = inlined_call_operand.vmem [shape: f32[128,2], index: 5, kind: input, shape index: {}]
  %s6 = inlined_call_operand.vmem [shape: f32[1,2], index: 6, kind: input, shape index: {}]
  %s7 = inlined_call_operand.vmem [shape: f32[8,2], index: 7, kind: output, shape index: {}]
  %s8 = sld [smem:[#allocation0]]
  $region38: #{tpu_custom_call.1} parent=0
    _
  %s10 = ssub.s32 1, %s8
  %s11 = scalar_select 0, %s10, %s8
  // Predicated region
  $region2: #{tpu_custom_call.1} parent=0 // pred_check
    _
  $region3: #{tpu_custom_call.1} parent=0 // pred_check_branch
    %13 = sbr.rel (0) target = $region5
  $region4: #{tpu_custom_call.1} parent=0 // pred_region
    _
  $region5: #{tpu_custom_call.1} parent=0 // pred_fallthru
    _
  // Predicated region
  $region6: #{tpu_custom_call.1} parent=0 // pred_check
    _
  $region7: #{tpu_custom_call.1} parent=0 // pred_check_branch
    %15 = sbr.rel (0) target = $region9
  $region8: #{tpu_custom_call.1} parent=0 // pred_region
    _
  $region9: #{tpu_custom_call.1} parent=0 // pred_fallthru
    _
  // Predicated region
  $region10: #{tpu_custom_call.1} parent=0 // pred_check
    _
  $region11: #{tpu_custom_call.1} parent=0 // pred_check_branch
    %17 = sbr.rel (0) target = $region13
  $region12: #{tpu_custom_call.1} parent=0 // pred_region
    _
  $region13: #{tpu_custom_call.1} parent=0 // pred_fallthru
    _
  // Predicated region
  $region14: #{tpu_custom_call.1} parent=0 // pred_check
    _
  $region15: #{tpu_custom_call.1} parent=0 // pred_check_branch
    %19 = sbr.rel (0) target = $region17
  $region16: #{tpu_custom_call.1} parent=0 // pred_region
    _
  $region17: #{tpu_custom_call.1} parent=0 // pred_fallthru
    _
  // Predicated region
  $region18: #{tpu_custom_call.1} parent=0 // pred_check
    _
  $region19: #{tpu_custom_call.1} parent=0 // pred_check_branch
    %21 = sbr.rel (0) target = $region21
  $region20: #{tpu_custom_call.1} parent=0 // pred_region
    _
  $region21: #{tpu_custom_call.1} parent=0 // pred_fallthru
    _
  // Predicated region
  $region22: #{tpu_custom_call.1} parent=0 // pred_check
    _
  $region23: #{tpu_custom_call.1} parent=0 // pred_check_branch
    %23 = sbr.rel (0) target = $region25
  $region24: #{tpu_custom_call.1} parent=0 // pred_region
    _
  $region25: #{tpu_custom_call.1} parent=0 // pred_fallthru
    _
  // Predicated region
  $region26: #{tpu_custom_call.1} parent=0 // pred_check
    _
  $region27: #{tpu_custom_call.1} parent=0 // pred_check_branch
    %25 = sbr.rel (0) target = $region29
  $region28: #{tpu_custom_call.1} parent=0 // pred_region
    _
  $region29: #{tpu_custom_call.1} parent=0 // pred_fallthru
    _
  %v26 = vld [vmem:[%s0] sm:$0xff]
  %v27 = vld [vmem:[%s1] sm:$0x1]
  %29 = vset.pattern.permute.xlu0 0
  %30 = vperm.xlu0 %29, %v26
  %v31 = vpop.permute.xlu0 %30
  %v33 = vlaneseq
  %v34 = vshrl.u32 %v33, 7
  %v35 = vsub.s32 0, %v34
  %v36 = vrot.slane %v27, %v35
  %v37 = vmul.f32 %v31, %v36
  %v38 = vld [vmem:[%s1 + $0x1] sm:$0x1]
  %39 = vset.pattern.permute.xlu0 1
  %40 = vperm.xlu0 %39, %v26
  %v41 = vpop.permute.xlu0 %40
  %v43 = vlaneseq
  %v44 = vshrl.u32 %v43, 7
  %v45 = vsub.s32 0, %v44
  %v46 = vrot.slane %v38, %v45
  %v47 = vmul.f32 %v41, %v46
  %v48 = vadd.f32 %v37, %v47
  %v49 = vld [vmem:[%s2] sm:$0x1]
  %v51 = vlaneseq
  %v52 = vshrl.u32 %v51, 7
  %v53 = vsub.s32 0, %v52
  %v54 = vrot.slane %v49, %v53
  %v56 = vadd.f32 %v48, %v54
  %v57 = vmax.f32 %v56, 0.0
  %v58 = vld [vmem:[%s3] sm:$0xff]
  %v59 = vld [vmem:[%s3 + $0x8] sm:$0xff]
  %v60 = vld [vmem:[%s3 + $0x10] sm:$0xff]
  %v61 = vld [vmem:[%s3 + $0x18] sm:$0xff]
  %v62 = vld [vmem:[%s3 + $0x20] sm:$0xff]
  %v63 = vld [vmem:[%s3 + $0x28] sm:$0xff]
  %v64 = vld [vmem:[%s3 + $0x30] sm:$0xff]
  %v65 = vld [vmem:[%s3 + $0x38] sm:$0xff]
  %v66 = vld [vmem:[%s3 + $0x40] sm:$0xff]
  %v67 = vld [vmem:[%s3 + $0x48] sm:$0xff]
  %v68 = vld [vmem:[%s3 + $0x50] sm:$0xff]
  %v69 = vld [vmem:[%s3 + $0x58] sm:$0xff]
  %v70 = vld [vmem:[%s3 + $0x60] sm:$0xff]
  %v71 = vld [vmem:[%s3 + $0x68] sm:$0xff]
  %v72 = vld [vmem:[%s3 + $0x70] sm:$0xff]
  %v73 = vld [vmem:[%s3 + $0x78] sm:$0xff]
  %v74 = vld [vmem:[%s4] sm:$0x1]
  %v76 = vlaneseq
  %v77 = vshrl.u32 %v76, 7
  %v78 = vsub.s32 0, %v77
  %v79 = vrot.slane %v74, %v78
  %81 = vmatprep.subr.mxu0 0.0
  %82 = vmatpush1.msra.mxu0 %v58
  %83 = vmatprep.subr.mxu0 0.0
  %84 = vmatpush1.msra.mxu0 %v59
  %85 = vmatprep.subr.mxu0 0.0
  %86 = vmatpush1.msra.mxu0 %v60
  %87 = vmatprep.subr.mxu0 0.0
  %88 = vmatpush1.msra.mxu0 %v61
  %89 = vmatprep.subr.mxu0 0.0
  %90 = vmatpush1.msra.mxu0 %v62
  %91 = vmatprep.subr.mxu0 0.0
  %92 = vmatpush1.msra.mxu0 %v63
  %93 = vmatprep.subr.mxu0 0.0
  %94 = vmatpush1.msra.mxu0 %v64
  %95 = vmatprep.subr.mxu0 0.0
  %96 = vmatpush1.msra.mxu0 %v65
  %97 = vmatprep.subr.mxu0 0.0
  %98 = vmatpush1.msra.mxu0 %v66
  %99 = vmatprep.subr.mxu0 0.0
  %100 = vmatpush1.msra.mxu0 %v67
  %101 = vmatprep.subr.mxu0 0.0
  %102 = vmatpush1.msra.mxu0 %v68
  %103 = vmatprep.subr.mxu0 0.0
  %104 = vmatpush1.msra.mxu0 %v69
  %105 = vmatprep.subr.mxu0 0.0
  %106 = vmatpush1.msra.mxu0 %v70
  %107 = vmatprep.subr.mxu0 0.0
  %108 = vmatpush1.msra.mxu0 %v71
  %109 = vmatprep.subr.mxu0 0.0
  %110 = vmatpush1.msra.mxu0 %v72
  %111 = vmatprep.subr.mxu0 0.0
  %112 = vmatpush1.msra.mxu0 %v73
  %113 = vmatprep.subr.mxu0 0.0
  %114 = vmatpush1.msra.mxu0 0.0
  %115 = vmatprep.subr.mxu0 0.0
  %116 = vmatpush1.msra.mxu0 0.0
  %117 = vmatprep.subr.mxu0 0.0
  %118 = vmatpush1.msra.mxu0 0.0
  %119 = vmatprep.subr.mxu0 0.0
  %120 = vmatpush1.msra.mxu0 0.0
  %121 = vmatprep.subr.mxu0 0.0
  %122 = vmatpush1.msra.mxu0 0.0
  %123 = vmatprep.subr.mxu0 0.0
  %124 = vmatpush1.msra.mxu0 0.0
  %125 = vmatprep.subr.mxu0 0.0
  %126 = vmatpush1.msra.mxu0 0.0
  %127 = vmatprep.subr.mxu0 0.0
  %128 = vmatpush1.msra.mxu0 0.0
  %129 = vmatprep.subr.mxu0 0.0
  %130 = vmatpush1.msra.mxu0 0.0
  %131 = vmatprep.subr.mxu0 0.0
  %132 = vmatpush1.msra.mxu0 0.0
  %133 = vmatprep.subr.mxu0 0.0
  %134 = vmatpush1.msra.mxu0 0.0
  %135 = vmatprep.subr.mxu0 0.0
  %136 = vmatpush1.msra.mxu0 0.0
  %137 = vmatprep.subr.mxu0 0.0
  %138 = vmatpush1.msra.mxu0 0.0
  %139 = vmatprep.subr.mxu0 0.0
  %140 = vmatpush1.msra.mxu0 0.0
  %141 = vmatprep.subr.mxu0 0.0
  %142 = vmatpush1.msra.mxu0 0.0
  %143 = vmatprep.subr.mxu0 0.0
  %144 = vmatpush1.msra.mxu0 0.0
  %145 = vmatprep.mubr.f32.mxu0 0.0
  %146 = vmatmul.mubr.f32.gmra.mrb[0].mxu0 %v57
  %v147 = vpop.f32.mrb[0].mxu0
  %v148 = vadd.f32 %v79, %v147
  %v149 = vpop.f32.mrb[0].mxu0
  %150 = vdwg.mxu0
  %v151 = vmax.f32 %v148, 0.0
  %v152 = vld [vmem:[%s5] sm:$0xff]
  %v153 = vld [vmem:[%s5 + $0x8] sm:$0xff]
  %v154 = vld [vmem:[%s5 + $0x10] sm:$0xff]
  %v155 = vld [vmem:[%s5 + $0x18] sm:$0xff]
  %v156 = vld [vmem:[%s5 + $0x20] sm:$0xff]
  %v157 = vld [vmem:[%s5 + $0x28] sm:$0xff]
  %v158 = vld [vmem:[%s5 + $0x30] sm:$0xff]
  %v159 = vld [vmem:[%s5 + $0x38] sm:$0xff]
  %v160 = vld [vmem:[%s5 + $0x40] sm:$0xff]
  %v161 = vld [vmem:[%s5 + $0x48] sm:$0xff]
  %v162 = vld [vmem:[%s5 + $0x50] sm:$0xff]
  %v163 = vld [vmem:[%s5 + $0x58] sm:$0xff]
  %v164 = vld [vmem:[%s5 + $0x60] sm:$0xff]
  %v165 = vld [vmem:[%s5 + $0x68] sm:$0xff]
  %v166 = vld [vmem:[%s5 + $0x70] sm:$0xff]
  %v167 = vld [vmem:[%s5 + $0x78] sm:$0xff]
  %v168 = vld [vmem:[%s6] sm:$0x1]
  %v170 = vlaneseq
  %v171 = vshrl.u32 %v170, 7
  %v172 = vsub.s32 0, %v171
  %v173 = vrot.slane %v168, %v172
  %175 = vmatprep.subr.mxu0 0.0
  %176 = vmatpush1.msra.mxu0 %v152
  %177 = vmatprep.subr.mxu0 0.0
  %178 = vmatpush1.msra.mxu0 %v153
  %179 = vmatprep.subr.mxu0 0.0
  %180 = vmatpush1.msra.mxu0 %v154
  %181 = vmatprep.subr.mxu0 0.0
  %182 = vmatpush1.msra.mxu0 %v155
  %183 = vmatprep.subr.mxu0 0.0
  %184 = vmatpush1.msra.mxu0 %v156
  %185 = vmatprep.subr.mxu0 0.0
  %186 = vmatpush1.msra.mxu0 %v157
  %187 = vmatprep.subr.mxu0 0.0
  %188 = vmatpush1.msra.mxu0 %v158
  %189 = vmatprep.subr.mxu0 0.0
  %190 = vmatpush1.msra.mxu0 %v159
  %191 = vmatprep.subr.mxu0 0.0
  %192 = vmatpush1.msra.mxu0 %v160
  %193 = vmatprep.subr.mxu0 0.0
  %194 = vmatpush1.msra.mxu0 %v161
  %195 = vmatprep.subr.mxu0 0.0
  %196 = vmatpush1.msra.mxu0 %v162
  %197 = vmatprep.subr.mxu0 0.0
  %198 = vmatpush1.msra.mxu0 %v163
  %199 = vmatprep.subr.mxu0 0.0
  %200 = vmatpush1.msra.mxu0 %v164
  %201 = vmatprep.subr.mxu0 0.0
  %202 = vmatpush1.msra.mxu0 %v165
  %203 = vmatprep.subr.mxu0 0.0
  %204 = vmatpush1.msra.mxu0 %v166
  %205 = vmatprep.subr.mxu0 0.0
  %206 = vmatpush1.msra.mxu0 %v167
  %207 = vmatprep.subr.mxu0 0.0
  %208 = vmatpush1.msra.mxu0 0.0
  %209 = vmatprep.subr.mxu0 0.0
  %210 = vmatpush1.msra.mxu0 0.0
  %211 = vmatprep.subr.mxu0 0.0
  %212 = vmatpush1.msra.mxu0 0.0
  %213 = vmatprep.subr.mxu0 0.0
  %214 = vmatpush1.msra.mxu0 0.0
  %215 = vmatprep.subr.mxu0 0.0
  %216 = vmatpush1.msra.mxu0 0.0
  %217 = vmatprep.subr.mxu0 0.0
  %218 = vmatpush1.msra.mxu0 0.0
  %219 = vmatprep.subr.mxu0 0.0
  %220 = vmatpush1.msra.mxu0 0.0
  %221 = vmatprep.subr.mxu0 0.0
  %222 = vmatpush1.msra.mxu0 0.0
  %223 = vmatprep.subr.mxu0 0.0
  %224 = vmatpush1.msra.mxu0 0.0
  %225 = vmatprep.subr.mxu0 0.0
  %226 = vmatpush1.msra.mxu0 0.0
  %227 = vmatprep.subr.mxu0 0.0
  %228 = vmatpush1.msra.mxu0 0.0
  %229 = vmatprep.subr.mxu0 0.0
  %230 = vmatpush1.msra.mxu0 0.0
  %231 = vmatprep.subr.mxu0 0.0
  %232 = vmatpush1.msra.mxu0 0.0
  %233 = vmatprep.subr.mxu0 0.0
  %234 = vmatpush1.msra.mxu0 0.0
  %235 = vmatprep.subr.mxu0 0.0
  %236 = vmatpush1.msra.mxu0 0.0
  %237 = vmatprep.subr.mxu0 0.0
  %238 = vmatpush1.msra.mxu0 0.0
  %239 = vmatprep.mubr.f32.mxu0 0.0
  %240 = vmatmul.mubr.f32.gmra.mrb[0].mxu0 %v151
  %v241 = vpop.f32.mrb[0].mxu0
  %v242 = vadd.f32 %v173, %v241
  %v243 = vpop.f32.mrb[0].mxu0
  %244 = vdwg.mxu0
  %vm245 = vcmask 15360
  %246 = vst.msk [vmem:[%s7] sm:$0xff] %vm245, %v242
  // Predicated region
  $region30: #{tpu_custom_call.1} parent=0 // pred_check
    _
  $region31: #{tpu_custom_call.1} parent=0 // pred_check_branch
    %248 = sbr.rel (0) target = $region33
  $region32: #{tpu_custom_call.1} parent=0 // pred_region
    _
  $region33: #{tpu_custom_call.1} parent=0 // pred_fallthru
    _
  // Predicated region
  $region34: #{tpu_custom_call.1} parent=0 // pred_check
    _
  $region35: #{tpu_custom_call.1} parent=0 // pred_check_branch
    %250 = sbr.rel (0) target = $region37
  $region36: #{tpu_custom_call.1} parent=0 // pred_region
    _
  $region37: #{tpu_custom_call.1} parent=0 // pred_fallthru
    _

</llo_original>
